<compile_context>
chip_gen: v6e
topology: v6e:2x2x1
jax: 0.10.0
libtpu: 0.0.40
codegen_flags: <defaults>
</compile_context>

<pallas_src>
import functools

import jax
import jax.numpy as jnp
from jax import lax
from jax.experimental import pallas as pl
from jax.experimental.pallas import tpu as pltpu


def _cos_decision_kernel(thr_ref, x1_ref, x2_ref, out_ref, *, eps):
    # thr_ref: SMEM scalar (prefetched). x1_ref/x2_ref: (TILE_B, D) VMEM tiles.
    x1 = x1_ref[...].astype(jnp.float32)
    x2 = x2_ref[...].astype(jnp.float32)

    w12 = jnp.sum(x1 * x2, axis=-1, keepdims=True)   # (TILE_B, 1) dot products
    w1 = jnp.sum(x1 * x1, axis=-1, keepdims=True)    # (TILE_B, 1) squared norms
    w2 = jnp.sum(x2 * x2, axis=-1, keepdims=True)

    # max(sqrt(w1*w2), eps) == sqrt(max(w1*w2, eps^2)); rsqrt goes to the EUP
    # slot and avoids a VPU divide chain.
    inv_denom = lax.rsqrt(jnp.maximum(w1 * w2, eps * eps))
    cos = w12 * inv_denom

    thr = thr_ref[0]
    out_ref[...] = (cos > thr).astype(jnp.int32)


def _pick_tile_b(B, D, itemsize):
    """Largest batch tile (multiple of 8, <=512) whose 2-input x 2-buffer
    footprint stays under ~20 MiB of VMEM (safe on v5e/v6e/v7x)."""
    budget_bytes = 20 * 1024 * 1024
    tb = budget_bytes // (4 * D * itemsize)            # 2 inputs * 2 buffers
    tb = max(8, min(512, tb))
    tb = (tb // 8) * 8
    # Don't pad tiny batches up to a huge tile.
    tb = min(tb, ((B + 7) // 8) * 8)
    return max(8, tb)


def cosine_similarity_decision(x1, x2, threshold, eps=1e-6):
    """x1, x2: (B, D) arrays (any float dtype). Returns bool (B,) decisions."""
    assert x1.shape == x2.shape and x1.ndim == 2
    B, D = x1.shape

    tile_b = _pick_tile_b(B, D, jnp.dtype(x1.dtype).itemsize)
    b_pad = ((B + tile_b - 1) // tile_b) * tile_b
    if b_pad != B:
        pad = ((0, b_pad - B), (0, 0))
        x1 = jnp.pad(x1, pad)
        x2 = jnp.pad(x2, pad)

    thr_arr = jnp.asarray([threshold], dtype=jnp.float32)

    out_i32 = pl.pallas_call(
        functools.partial(_cos_decision_kernel, eps=float(eps)),
        out_shape=jax.ShapeDtypeStruct((b_pad, 1), jnp.int32),
        grid_spec=pltpu.PrefetchScalarGridSpec(
            num_scalar_prefetch=1,
            grid=(b_pad // tile_b,),
            in_specs=[
                pl.BlockSpec((tile_b, D), lambda i, thr: (i, 0)),
                pl.BlockSpec((tile_b, D), lambda i, thr: (i, 0)),
            ],
            out_specs=pl.BlockSpec((tile_b, 1), lambda i, thr: (i, 0)),
        ),
        compiler_params=pltpu.CompilerParams(
            dimension_semantics=("parallel",),
            vmem_limit_bytes=32 * 1024 * 1024,
        ),
    )(thr_arr, x1, x2)

    # Glue: drop padded rows and cast 0/1 int32 back to bool like PyTorch.
    return out_i32[:B, 0].astype(jnp.bool_)


def _reference(x1, x2, threshold, eps=1e-6):
    x1 = x1.astype(jnp.float32)
    x2 = x2.astype(jnp.float32)
    w12 = jnp.sum(x1 * x2, axis=1)
    w1 = jnp.sum(x1 * x1, axis=1)
    w2 = jnp.sum(x2 * x2, axis=1)
    cos = w12 / jnp.maximum(jnp.sqrt(w1 * w2), eps)
    return cos > threshold


if __name__ == "__main__":
    key = jax.random.PRNGKey(0)
    k1, k2 = jax.random.split(key)

    threshold = 0.3                   # kwargs['threshold'] — synthetic value

    # Case 1: small batch, f32, batch not a multiple of the tile size.
    B, D = 10, 32
    x1 = jax.random.normal(k1, (B, D), dtype=jnp.float32)
    x2 = jax.random.normal(k2, (B, D), dtype=jnp.float32)
    # Make one pair highly similar so both branches of the decision appear.
    x2 = x2.at[0].set(x1[0] + 0.01 * x2[0])

    decisions = jax.block_until_ready(
        cosine_similarity_decision(x1, x2, threshold))
    ref = _reference(x1, x2, threshold)
    assert decisions.shape == (B,)
    assert decisions.dtype == jnp.bool_
    assert bool(jnp.all(decisions == ref))

    # Case 2: bf16 storage (halves HBM traffic); accumulation stays f32.
    x1b = x1.astype(jnp.bfloat16)
    x2b = x2.astype(jnp.bfloat16)
    decisions_bf16 = jax.block_until_ready(
        cosine_similarity_decision(x1b, x2b, threshold))
    ref_bf16 = _reference(x1b, x2b, threshold)
    assert bool(jnp.all(decisions_bf16 == ref_bf16))

    print("KERNEL_OK")
</pallas_src>

<mosaic_0001>
module attributes {stable_mosaic.version = 11 : i64} {
  func.func @_cos_decision_kernel(%arg0: i32, %arg1: memref<1xf32, #tpu.memory_space<smem>>, %arg2: memref<16x32xf32, #tpu.memory_space<vmem>>, %arg3: memref<16x32xf32, #tpu.memory_space<vmem>>, %arg4: memref<16x1xi32, #tpu.memory_space<vmem>>) attributes {dimension_semantics = [#tpu.dimension_semantics<parallel>], iteration_bounds = array<i64: 1>, scalar_prefetch = 1 : i64, scratch_operands = 0 : i64, tpu.core_type = #tpu.core_type<tc>, window_params = [{transform_indices = @transform_0, window_bounds = array<i64: 16, 32>}, {transform_indices = @transform_1, window_bounds = array<i64: 16, 32>}, {transform_indices = @transform_2, window_bounds = array<i64: 16, 1>}]} {
    %c0 = arith.constant 0 : index
    %c0_0 = arith.constant 0 : index
    %0 = vector.load %arg2[%c0, %c0_0] : memref<16x32xf32, #tpu.memory_space<vmem>>, vector<16x32xf32>
    %c0_1 = arith.constant 0 : index
    %c0_2 = arith.constant 0 : index
    %1 = vector.load %arg3[%c0_1, %c0_2] : memref<16x32xf32, #tpu.memory_space<vmem>>, vector<16x32xf32>
    %2 = arith.mulf %0, %1 : vector<16x32xf32>
    %cst = arith.constant dense<0.000000e+00> : vector<16xf32>
    %3 = vector.multi_reduction <add>, %2, %cst [1] : vector<16x32xf32> to vector<16xf32>
    %4 = vector.shape_cast %3 : vector<16xf32> to vector<16x1xf32>
    %5 = arith.mulf %0, %0 : vector<16x32xf32>
    %cst_3 = arith.constant dense<0.000000e+00> : vector<16xf32>
    %6 = vector.multi_reduction <add>, %5, %cst_3 [1] : vector<16x32xf32> to vector<16xf32>
    %7 = vector.shape_cast %6 : vector<16xf32> to vector<16x1xf32>
    %8 = arith.mulf %1, %1 : vector<16x32xf32>
    %cst_4 = arith.constant dense<0.000000e+00> : vector<16xf32>
    %9 = vector.multi_reduction <add>, %8, %cst_4 [1] : vector<16x32xf32> to vector<16xf32>
    %10 = vector.shape_cast %9 : vector<16xf32> to vector<16x1xf32>
    %11 = arith.mulf %7, %10 : vector<16x1xf32>
    %cst_5 = arith.constant 9.99999996E-13 : f32
    %12 = vector.broadcast %cst_5 : f32 to vector<16x1xf32>
    %13 = arith.maximumf %11, %12 : vector<16x1xf32>
    %14 = math.rsqrt %13 : vector<16x1xf32>
    %15 = arith.mulf %4, %14 : vector<16x1xf32>
    %c0_6 = arith.constant 0 : index
    %16 = memref.load %arg1[%c0_6] : memref<1xf32, #tpu.memory_space<smem>>
    %17 = vector.broadcast %16 : f32 to vector<16x1xf32>
    %18 = arith.cmpf ogt, %15, %17 : vector<16x1xf32>
    %19 = arith.extui %18 : vector<16x1xi1> to vector<16x1xi32>
    %c0_7 = arith.constant 0 : index
    %c0_8 = arith.constant 0 : index
    %20 = vector.load %arg4[%c0_7, %c0_8] : memref<16x1xi32, #tpu.memory_space<vmem>>, vector<16x1xi32>
    tpu.vector_store %arg4[%c0_7, %c0_8], %19 {strides = array<i32>} : memref<16x1xi32, #tpu.memory_space<vmem>>, vector<16x1xi32>,
    return
  }
  func.func @transform_0(%arg0: i32, %arg1: memref<1xf32, #tpu.memory_space<smem>>) -> (i32, i32) {
    %c0_i32 = arith.constant 0 : i32
    %c0_i32_0 = arith.constant 0 : i32
    return %arg0, %c0_i32 : i32, i32
  }
  func.func @transform_1(%arg0: i32, %arg1: memref<1xf32, #tpu.memory_space<smem>>) -> (i32, i32) {
    %c0_i32 = arith.constant 0 : i32
    %c0_i32_0 = arith.constant 0 : i32
    return %arg0, %c0_i32 : i32, i32
  }
  func.func @transform_2(%arg0: i32, %arg1: memref<1xf32, #tpu.memory_space<smem>>) -> (i32, i32) {
    %c0_i32 = arith.constant 0 : i32
    %c0_i32_0 = arith.constant 0 : i32
    return %arg0, %c0_i32 : i32, i32
  }
}

</mosaic_0001>

<llo_original>
// kernel: tpu_custom_call.1
$region0: #{tpu_custom_call.1}
  #allocation0 [shape = 'u32[]', space=smem, size = 0x4, offset = 0x4, fixed_abs, tag = 'smem constant byte address 0x4 - core index']
  #allocation1 [shape = 'u32[144,128]{1,0:T(1,128)}', space=vmem, size = 0x12000, scoped, tag = 'internal scratch']
  #allocation2 [shape = 's32[1]{0}', space=sflag, size = 0x4, scoped, tag = 'scoped memory for tpu_custom_call.1']
  #allocation3 [shape = 'f32[1]{0:T(128)S(6)}', space=smem, size = 0x200, scoped, tag = 'prefetched SMEM operand 0']
  %s0 = inlined_call_operand.<no memory space> [shape: f32[1], index: 0, kind: input, shape index: {}]
  %s1 = inlined_call_operand.hbm [shape: f32[16,32], index: 1, kind: input, shape index: {}]
  %s2 = inlined_call_operand.hbm [shape: f32[16,32], index: 2, kind: input, shape index: {}]
  %s3 = inlined_call_operand.vmem [shape: s32[16,1], index: 3, kind: output, shape index: {}]
  %s4 = sld [smem:[#allocation0]]
  $region26: #{tpu_custom_call.1} parent=0
    _
  %s6 = ssub.s32 1, %s4
  %s7 = scalar_select 0, %s6, %s4
  %8 = sst [smem:[#allocation3]] %s0
  $region1: #{tpu_custom_call.1} parent=0
    #allocation4 [shape = 'u8[8192]{0}', space=vmem, size = 0x2000, scoped, tag = 'input window, operand 1, single buffered']
    #allocation5 [shape = 's32[1]{0}', space=sflag, size = 0x4, scoped, tag = 'scoped memory for tpu_custom_call.1']
    #allocation6 [shape = 'u8[8192]{0}', space=vmem, size = 0x2000, scoped, tag = 'input window, operand 2, single buffered']
    #allocation7 [shape = 's32[1]{0}', space=sflag, size = 0x4, scoped, tag = 'scoped memory for tpu_custom_call.1']
    %9 = vsyncpa [#allocation5], 0
    %10 = vsyncpa [#allocation7], 0
    // Predicated region
    $region2: #{tpu_custom_call.1} parent=1 // pred_check
      _
    $region3: #{tpu_custom_call.1} parent=1 // pred_check_branch
      %12 = sbr.rel (0) target = $region5
    $region4: #{tpu_custom_call.1} parent=1 // pred_region
      %s14 = ssub.s32 256, 256
      %15 = vsyncadd [#allocation5], %s14
      %s16 = sshll.u32 [#allocation4], 4
      %s17 = int_to_ptr.vmem [resolvable:$true] %s16
      %22 = dma.hbm_to_vmem [thread:$0]  %s1, 256, %s17, [#allocation5], 128, 128, 8
    $region5: #{tpu_custom_call.1} parent=1 // pred_fallthru
      _
    // Predicated region
    $region6: #{tpu_custom_call.1} parent=1 // pred_check
      _
    $region7: #{tpu_custom_call.1} parent=1 // pred_check_branch
      %24 = sbr.rel (0) target = $region9
    $region8: #{tpu_custom_call.1} parent=1 // pred_region
      %s26 = ssub.s32 256, 256
      %27 = vsyncadd [#allocation7], %s26
      %s28 = sshll.u32 [#allocation6], 4
      %s29 = int_to_ptr.vmem [resolvable:$true] %s28
      %34 = dma.hbm_to_vmem [thread:$0]  %s2, 256, %s29, [#allocation7], 128, 128, 8
    $region9: #{tpu_custom_call.1} parent=1 // pred_fallthru
      _
    // Predicated region
    $region10: #{tpu_custom_call.1} parent=1 // pred_check
      _
    $region11: #{tpu_custom_call.1} parent=1 // pred_check_branch
      %36 = sbr.rel (0) target = $region13
    $region12: #{tpu_custom_call.1} parent=1 // pred_region
      %37 = dma.done [#allocation5], 256
    $region13: #{tpu_custom_call.1} parent=1 // pred_fallthru
      _
    // Predicated region
    $region14: #{tpu_custom_call.1} parent=1 // pred_check
      _
    $region15: #{tpu_custom_call.1} parent=1 // pred_check_branch
      %39 = sbr.rel (0) target = $region17
    $region16: #{tpu_custom_call.1} parent=1 // pred_region
      %40 = dma.done [#allocation7], 256
    $region17: #{tpu_custom_call.1} parent=1 // pred_fallthru
      _
    %v41 = vld [vmem:[#allocation4] sm:$0xff]
    %v42 = vld [vmem:[#allocation4 + $0x8] sm:$0xff]
    %v43 = vld [vmem:[#allocation6] sm:$0xff]
    %v44 = vld [vmem:[#allocation6 + $0x8] sm:$0xff]
    %v45 = vmul.f32 %v41, %v43
    %v46 = vmul.f32 %v42, %v44
    %vm47 = vcmask 261120
    %v48 = vsel %vm47, %v45, 0.0
    %49 = vadd.xlane.f32.xlu0 %v48
    %v50 = vpop.xlane.xlu0 %49
    %v51 = vsel %vm47, %v46, 0.0
    %52 = vadd.xlane.f32.xlu0 %v51
    %v53 = vpop.xlane.xlu0 %52
    %v54 = vmul.f32 %v41, %v41
    %v55 = vmul.f32 %v42, %v42
    %v56 = vsel %vm47, %v54, 0.0
    %57 = vadd.xlane.f32.xlu0 %v56
    %v58 = vpop.xlane.xlu0 %57
    %v59 = vsel %vm47, %v55, 0.0
    %60 = vadd.xlane.f32.xlu0 %v59
    %v61 = vpop.xlane.xlu0 %60
    %v62 = vmul.f32 %v43, %v43
    %v63 = vmul.f32 %v44, %v44
    %v64 = vsel %vm47, %v62, 0.0
    %65 = vadd.xlane.f32.xlu0 %v64
    %v66 = vpop.xlane.xlu0 %65
    %v67 = vsel %vm47, %v63, 0.0
    %68 = vadd.xlane.f32.xlu0 %v67
    %v69 = vpop.xlane.xlu0 %68
    %v70 = vmul.f32 %v58, %v66
    %v71 = vmul.f32 %v61, %v69
    %v72 = vmax.f32 %v70, 1e-12
    %v73 = vmax.f32 %v71, 1e-12
    %v74 = vrsqrt.pop %v72
    %v75 = vrsqrt.pop %v73
    %v76 = vmul.f32 %v50, %v74
    %v77 = vmul.f32 %v53, %v75
    %s78 = sld [smem:[#allocation3]]
    %v79 = vstv %s78
    %vm80 = vcmp.gt.f32.partialorder %v76, %v79
    %vm81 = vcmp.gt.f32.partialorder %v77, %v79
    %v82 = vsel %vm80, 1, 0
    %v83 = vsel %vm81, 1, 0
    %vm84 = vcmask 7168
    %85 = vst.msk [vmem:[%s3] sm:$0xff] %vm84, %v82
    %86 = vst.msk [vmem:[%s3 + $0x8] sm:$0xff] %vm84, %v83
    // Predicated region
    $region18: #{tpu_custom_call.1} parent=1 // pred_check
      _
    $region19: #{tpu_custom_call.1} parent=1 // pred_check_branch
      %88 = sbr.rel (0) target = $region21
    $region20: #{tpu_custom_call.1} parent=1 // pred_region
      _
    $region21: #{tpu_custom_call.1} parent=1 // pred_fallthru
      _
    // Predicated region
    $region22: #{tpu_custom_call.1} parent=1 // pred_check
      _
    $region23: #{tpu_custom_call.1} parent=1 // pred_check_branch
      %90 = sbr.rel (0) target = $region25
    $region24: #{tpu_custom_call.1} parent=1 // pred_region
      _
    $region25: #{tpu_custom_call.1} parent=1 // pred_fallthru
      _
    %91 = vsyncpa [#allocation5], 1
    %92 = vsyncpa [#allocation7], 1

</llo_original>
